<compile_context>
chip_gen: v5e
topology: v5e:2x2
jax: 0.10.0
libtpu: 0.0.40
codegen_flags: <defaults>
</compile_context>

<pallas_src>
import jax
import jax.numpy as jnp
from jax import lax
from jax.experimental import pallas as pl
from jax.experimental.pallas import tpu as pltpu


def _choose_block_q(S, max_tq):
    """Largest divisor of S that is a multiple of 8 and <= max_tq (else S)."""
    if S <= max_tq:
        return S
    for t in range(min(max_tq, S), 7, -1):
        if t % 8 == 0 and S % t == 0:
            return t
    return S


def _vmem_budget():
    """(vmem_limit_bytes, max_q_tile) tuned per TPU generation."""
    try:
        cap = int(pltpu.get_tpu_info().vmem_capacity_bytes)
    except Exception:  # API drift / non-TPU interpret fallback: be conservative
        cap = 128 * 1024 * 1024
    if cap <= 64 * 1024 * 1024:          # v7x: 64 MiB per TensorCore
        return 48 * 1024 * 1024, 128     # leave headroom for internal scratch
    return 100 * 1024 * 1024, 256        # v5e / v6e: 128 MiB physical


def _make_mha_kernel(n_head, head_dim, compute_dtype, with_attn):
    cd = compute_dtype

    def kernel(q_ref, k_ref, v_ref, wq_ref, wk_ref, wv_ref, wo_ref, *rest):
        if with_attn:
            out_ref, attn_ref, kp_ref, vp_ref = rest
        else:
            out_ref, kp_ref, vp_ref = rest
            attn_ref = None

        # --- K/V projections: once per batch element (first Q tile only). ---
        @pl.when(pl.program_id(1) == 0)
        def _():
            kp_ref[...] = jnp.dot(k_ref[0].astype(cd), wk_ref[...],
                                  preferred_element_type=jnp.float32).astype(cd)
            vp_ref[...] = jnp.dot(v_ref[0].astype(cd), wv_ref[...],
                                  preferred_element_type=jnp.float32).astype(cd)

        # Q projection for this tile; 1/sqrt(D) is pre-folded into Wq.
        q_all = jnp.dot(q_ref[0].astype(cd), wq_ref[...],
                        preferred_element_type=jnp.float32).astype(cd)  # (TQ,H)

        # n_head is small & static -> unrolled loop; live temporaries are just
        # one (TQ,S) score tile + the accumulated per-head PV slices.
        pv_parts = []
        for h in range(n_head):
            sl = slice(h * head_dim, (h + 1) * head_dim)
            # scores: contract over D of both operands (no materialized k.T)
            s = lax.dot_general(q_all[:, sl], kp_ref[:, sl],
                                (((1,), (1,)), ((), ())),
                                preferred_element_type=jnp.float32)     # (TQ,S)
            # numerically-stable softmax in f32, exact division
            m = jnp.max(s, axis=-1, keepdims=True)
            e = jnp.exp(s - m)
            p = e / jnp.sum(e, axis=-1, keepdims=True)
            if attn_ref is not None:
                attn_ref[h, 0] = p.astype(attn_ref.dtype)
            pv_parts.append(jnp.dot(p.astype(cd), vp_ref[:, sl],
                                    preferred_element_type=jnp.float32
                                    ).astype(cd))                        # (TQ,D)

        # Single full-depth output projection: (TQ,H) @ (H,H).
        pv_all = jnp.concatenate(pv_parts, axis=-1)                      # (TQ,H)
        out_ref[0] = jnp.dot(pv_all, wo_ref[...],
                             preferred_element_type=jnp.float32
                             ).astype(out_ref.dtype)

    return kernel


def multi_head_attention(query, key, value, wq, wk, wv, wo, *,
                         compute_dtype=jnp.bfloat16,
                         attn_dtype=jnp.float32,
                         return_attn=True,
                         block_q=None):
    """query/key/value: (B, S, H); wq/wk/wv: (NH, H, D); wo: (H, H).

    Weights are stored pre-transposed vs. nn.Linear (so q = x @ Wq[h]).
    Returns (output (B,S,H) f32, attentions (NH,B,S,S) attn_dtype or None)."""
    B, S, H = query.shape
    NH, _, D = wq.shape
    assert NH * D == H
    scale = 1.0 / float(D) ** 0.5

    # Fuse per-head projections: (NH,H,D) -> (H, NH*D); column block
    # [h*D:(h+1)*D] of x @ Wf is head h's projection.  Scale folded into Wq.
    wq_f = (jnp.transpose(wq, (1, 0, 2)).reshape(H, H) * scale).astype(compute_dtype)
    wk_f = jnp.transpose(wk, (1, 0, 2)).reshape(H, H).astype(compute_dtype)
    wv_f = jnp.transpose(wv, (1, 0, 2)).reshape(H, H).astype(compute_dtype)
    wo_c = wo.astype(compute_dtype)

    vmem_limit, max_tq = _vmem_budget()
    if block_q is not None:
        max_tq = block_q
    tq = _choose_block_q(S, max_tq)
    assert S % tq == 0, "sequence length must be divisible by the Q tile"
    n_qt = S // tq

    kernel = _make_mha_kernel(NH, D, compute_dtype, return_attn)

    out_shapes = [jax.ShapeDtypeStruct((B, S, H), jnp.float32)]
    out_specs = [pl.BlockSpec((1, tq, H), lambda b, qi: (b, qi, 0))]
    if return_attn:
        out_shapes.append(jax.ShapeDtypeStruct((NH, B, S, S), attn_dtype))
        out_specs.append(pl.BlockSpec((NH, 1, tq, S), lambda b, qi: (0, b, qi, 0)))

    attn_bytes = jnp.dtype(attn_dtype).itemsize if return_attn else 0
    cost = pl.CostEstimate(
        flops=int(8 * B * S * H * H + 4 * B * S * S * H),
        transcendentals=int(NH * B * S * S),
        bytes_accessed=int(4 * (3 * B * S * H + 4 * H * H + B * S * H)
                           + attn_bytes * NH * B * S * S),
    )

    results = pl.pallas_call(
        kernel,
        out_shape=tuple(out_shapes),
        grid_spec=pltpu.PrefetchScalarGridSpec(
            num_scalar_prefetch=0,
            grid=(B, n_qt),
            in_specs=[
                pl.BlockSpec((1, tq, H), lambda b, qi: (b, qi, 0)),  # query tile
                pl.BlockSpec((1, S, H), lambda b, qi: (b, 0, 0)),    # key (full seq)
                pl.BlockSpec((1, S, H), lambda b, qi: (b, 0, 0)),    # value (full seq)
                pl.BlockSpec((H, H), lambda b, qi: (0, 0)),          # Wq (scaled, fused)
                pl.BlockSpec((H, H), lambda b, qi: (0, 0)),          # Wk (fused)
                pl.BlockSpec((H, H), lambda b, qi: (0, 0)),          # Wv (fused)
                pl.BlockSpec((H, H), lambda b, qi: (0, 0)),          # Wo
            ],
            out_specs=out_specs,
            scratch_shapes=[
                pltpu.VMEM((S, H), compute_dtype),   # projected K (per batch elem)
                pltpu.VMEM((S, H), compute_dtype),   # projected V (per batch elem)
            ],
        ),
        compiler_params=pltpu.CompilerParams(
            # qi axis is "arbitrary": K/V scratch computed at qi==0 is reused
            # by later Q tiles of the same batch element.
            dimension_semantics=("parallel", "arbitrary"),
            vmem_limit_bytes=vmem_limit,
        ),
        cost_estimate=cost,
    )(query, key, value, wq_f, wk_f, wv_f, wo_c)

    if return_attn:
        return results[0], results[1]
    return results[0], None


def _reference(query, key, value, wq, wk, wv, wo):
    # pure-JAX f32 reference for sanity checking
    D = wq.shape[-1]
    q = jnp.einsum("bsh,nhd->nbsd", query, wq)
    k = jnp.einsum("bsh,nhd->nbsd", key, wk)
    v = jnp.einsum("bsh,nhd->nbsd", value, wv)
    s = jnp.einsum("nbqd,nbkd->nbqk", q, k) / jnp.sqrt(jnp.float32(D))
    p = jax.nn.softmax(s, axis=-1)
    wv_out = jnp.einsum("nbqk,nbkd->nbqd", p, v)        # (NH, B, S, D)
    concat = jnp.concatenate(list(wv_out), axis=-1)     # (B, S, H)
    return concat @ wo, p                               # attn: (NH, B, S, S)


if __name__ == "__main__":
    B, S, H, NH = 2, 8, 32, 4
    D = H // NH

    key0 = jax.random.PRNGKey(0)
    kq, kk, kv, kwq, kwk, kwv, kwo = jax.random.split(key0, 7)

    query = jax.random.normal(kq, (B, S, H), dtype=jnp.float32)
    key_in = jax.random.normal(kk, (B, S, H), dtype=jnp.float32)
    value = jax.random.normal(kv, (B, S, H), dtype=jnp.float32)

    # deterministic weight init (stand-in for init_weight); stored pre-transposed
    # relative to nn.Linear's (out, in) convention so q = x @ Wq[h].
    wq = jax.random.normal(kwq, (NH, H, D), dtype=jnp.float32) * 0.1
    wk = jax.random.normal(kwk, (NH, H, D), dtype=jnp.float32) * 0.1
    wv = jax.random.normal(kwv, (NH, H, D), dtype=jnp.float32) * 0.1
    wo = jax.random.normal(kwo, (H, H), dtype=jnp.float32) * 0.1

    ref_out, ref_attn = _reference(query, key_in, value, wq, wk, wv, wo)

    # f32 compute path: tight check against the pure-JAX reference
    out32, attn32 = multi_head_attention(query, key_in, value, wq, wk, wv, wo,
                                         compute_dtype=jnp.float32)
    out32 = jax.block_until_ready(out32)
    attn32 = jax.block_until_ready(attn32)
    assert jnp.allclose(out32, ref_out, atol=2e-3, rtol=2e-3)
    assert jnp.allclose(attn32, ref_attn, atol=2e-3, rtol=2e-3)

    # bf16 MXU path (default): looser check (bf16 inputs, f32 accumulation)
    out16, attn16 = multi_head_attention(query, key_in, value, wq, wk, wv, wo,
                                         compute_dtype=jnp.bfloat16)
    out16 = jax.block_until_ready(out16)
    attn16 = jax.block_until_ready(attn16)
    assert jnp.allclose(out16, ref_out, atol=5e-2, rtol=5e-2)
    assert jnp.allclose(attn16, ref_attn, atol=5e-2, rtol=5e-2)

    # need_weights=False style path (no O(S^2) attention-map writeback)
    out_nw, attn_nw = multi_head_attention(query, key_in, value, wq, wk, wv, wo,
                                           return_attn=False)
    out_nw = jax.block_until_ready(out_nw)
    assert attn_nw is None
    assert jnp.allclose(out_nw, ref_out, atol=5e-2, rtol=5e-2)

    print("KERNEL_OK")
</pallas_src>

<mosaic_0001>
module attributes {stable_mosaic.version = 11 : i64} {
  func.func @kernel(%arg0: i32, %arg1: i32, %arg2: memref<1x8x32xf32, #tpu.memory_space<vmem>>, %arg3: memref<1x8x32xf32, #tpu.memory_space<vmem>>, %arg4: memref<1x8x32xf32, #tpu.memory_space<vmem>>, %arg5: memref<32x32xf32, #tpu.memory_space<vmem>>, %arg6: memref<32x32xf32, #tpu.memory_space<vmem>>, %arg7: memref<32x32xf32, #tpu.memory_space<vmem>>, %arg8: memref<32x32xf32, #tpu.memory_space<vmem>>, %arg9: memref<1x8x32xf32, #tpu.memory_space<vmem>>, %arg10: memref<4x1x8x8xf32, #tpu.memory_space<vmem>>, %arg11: memref<8x32xf32, #tpu.memory_space<vmem>>, %arg12: memref<8x32xf32, #tpu.memory_space<vmem>>) attributes {dimension_semantics = [#tpu.dimension_semantics<parallel>, #tpu.dimension_semantics<arbitrary>], iteration_bounds = array<i64: 2, 1>, scalar_prefetch = 0 : i64, scratch_operands = 2 : i64, tpu.core_type = #tpu.core_type<tc>, window_params = [{transform_indices = @transform_0, window_bounds = array<i64: 1, 8, 32>}, {transform_indices = @transform_1, window_bounds = array<i64: 1, 8, 32>}, {transform_indices = @transform_2, window_bounds = array<i64: 1, 8, 32>}, {pipeline_mode = #tpu.pipeline_mode<synchronous>, transform_indices = @transform_3, window_bounds = array<i64: 32, 32>}, {pipeline_mode = #tpu.pipeline_mode<synchronous>, transform_indices = @transform_4, window_bounds = array<i64: 32, 32>}, {pipeline_mode = #tpu.pipeline_mode<synchronous>, transform_indices = @transform_5, window_bounds = array<i64: 32, 32>}, {pipeline_mode = #tpu.pipeline_mode<synchronous>, transform_indices = @transform_6, window_bounds = array<i64: 32, 32>}, {transform_indices = @transform_7, window_bounds = array<i64: 1, 8, 32>}, {transform_indices = @transform_8, window_bounds = array<i64: 4, 1, 8, 8>}]} {
    %c0_i32 = arith.constant 0 : i32
    %0 = arith.cmpi eq, %arg1, %c0_i32 : i32
    %1 = arith.extui %0 : i1 to i32
    %c0_i32_0 = arith.constant 0 : i32
    %2 = arith.cmpi ne, %1, %c0_i32_0 : i32
    scf.if %2 {
      %c0_53 = arith.constant 0 : index
      %c0_54 = arith.constant 0 : index
      %c0_55 = arith.constant 0 : index
      %81 = vector.load %arg3[%c0_53, %c0_54, %c0_55] : memref<1x8x32xf32, #tpu.memory_space<vmem>>, vector<1x8x32xf32>
      %82 = vector.shape_cast %81 : vector<1x8x32xf32> to vector<8x32xf32>
      %c0_56 = arith.constant 0 : index
      %c0_57 = arith.constant 0 : index
      %83 = vector.load %arg6[%c0_56, %c0_57] : memref<32x32xf32, #tpu.memory_space<vmem>>, vector<32x32xf32>
      %cst_58 = arith.constant dense<0.000000e+00> : vector<8x32xf32>
      %84 = tpu.matmul %82, %83, %cst_58 {dimension_numbers = #tpu.dot_dimension_numbers<[1], [0], [0], [1], [0, 0, 1, 1], [], []>} : vector<8x32xf32>, vector<32x32xf32>, vector<8x32xf32> -> vector<8x32xf32>
      %c0_59 = arith.constant 0 : index
      %c0_60 = arith.constant 0 : index
      %85 = vector.load %arg11[%c0_59, %c0_60] : memref<8x32xf32, #tpu.memory_space<vmem>>, vector<8x32xf32>
      tpu.vector_store %arg11[%c0_59, %c0_60], %84 {strides = array<i32>} : memref<8x32xf32, #tpu.memory_space<vmem>>, vector<8x32xf32>,
      %c0_61 = arith.constant 0 : index
      %c0_62 = arith.constant 0 : index
      %c0_63 = arith.constant 0 : index
      %86 = vector.load %arg4[%c0_61, %c0_62, %c0_63] : memref<1x8x32xf32, #tpu.memory_space<vmem>>, vector<1x8x32xf32>
      %87 = vector.shape_cast %86 : vector<1x8x32xf32> to vector<8x32xf32>
      %c0_64 = arith.constant 0 : index
      %c0_65 = arith.constant 0 : index
      %88 = vector.load %arg7[%c0_64, %c0_65] : memref<32x32xf32, #tpu.memory_space<vmem>>, vector<32x32xf32>
      %cst_66 = arith.constant dense<0.000000e+00> : vector<8x32xf32>
      %89 = tpu.matmul %87, %88, %cst_66 {dimension_numbers = #tpu.dot_dimension_numbers<[1], [0], [0], [1], [0, 0, 1, 1], [], []>} : vector<8x32xf32>, vector<32x32xf32>, vector<8x32xf32> -> vector<8x32xf32>
      %c0_67 = arith.constant 0 : index
      %c0_68 = arith.constant 0 : index
      %90 = vector.load %arg12[%c0_67, %c0_68] : memref<8x32xf32, #tpu.memory_space<vmem>>, vector<8x32xf32>
      tpu.vector_store %arg12[%c0_67, %c0_68], %89 {strides = array<i32>} : memref<8x32xf32, #tpu.memory_space<vmem>>, vector<8x32xf32>,
    } else {
    }
    %c0 = arith.constant 0 : index
    %c0_1 = arith.constant 0 : index
    %c0_2 = arith.constant 0 : index
    %3 = vector.load %arg2[%c0, %c0_1, %c0_2] : memref<1x8x32xf32, #tpu.memory_space<vmem>>, vector<1x8x32xf32>
    %4 = vector.shape_cast %3 : vector<1x8x32xf32> to vector<8x32xf32>
    %c0_3 = arith.constant 0 : index
    %c0_4 = arith.constant 0 : index
    %5 = vector.load %arg5[%c0_3, %c0_4] : memref<32x32xf32, #tpu.memory_space<vmem>>, vector<32x32xf32>
    %cst = arith.constant dense<0.000000e+00> : vector<8x32xf32>
    %6 = tpu.matmul %4, %5, %cst {dimension_numbers = #tpu.dot_dimension_numbers<[1], [0], [0], [1], [0, 0, 1, 1], [], []>} : vector<8x32xf32>, vector<32x32xf32>, vector<8x32xf32> -> vector<8x32xf32>
    %7 = vector.extract_strided_slice %6 {offsets = [0, 0], sizes = [8, 8], strides = [1, 1]} : vector<8x32xf32> to vector<8x8xf32>
    %c0_5 = arith.constant 0 : index
    %c0_6 = arith.constant 0 : index
    %8 = vector.load %arg11[%c0_5, %c0_6] : memref<8x32xf32, #tpu.memory_space<vmem>>, vector<8x8xf32>
    %cst_7 = arith.constant dense<0.000000e+00> : vector<8x8xf32>
    %9 = tpu.matmul %7, %8, %cst_7 {dimension_numbers = #tpu.dot_dimension_numbers<[1], [1], [0], [0], [0, 0, 1, 0], [], []>} : vector<8x8xf32>, vector<8x8xf32>, vector<8x8xf32> -> vector<8x8xf32>
    %cst_8 = arith.constant dense<0xFF800000> : vector<8xf32>
    %10 = vector.multi_reduction <maximumf>, %9, %cst_8 [1] : vector<8x8xf32> to vector<8xf32>
    %11 = vector.shape_cast %10 : vector<8xf32> to vector<8x1xf32>
    %12 = vector.broadcast %11 : vector<8x1xf32> to vector<8x8xf32>
    %13 = arith.subf %9, %12 : vector<8x8xf32>
    %14 = math.exp %13 : vector<8x8xf32>
    %cst_9 = arith.constant dense<0.000000e+00> : vector<8xf32>
    %15 = vector.multi_reduction <add>, %14, %cst_9 [1] : vector<8x8xf32> to vector<8xf32>
    %16 = vector.shape_cast %15 : vector<8xf32> to vector<8x1xf32>
    %17 = vector.broadcast %16 : vector<8x1xf32> to vector<8x8xf32>
    %18 = arith.divf %14, %17 : vector<8x8xf32>
    %c0_10 = arith.constant 0 : index
    %c0_11 = arith.constant 0 : index
    %c0_12 = arith.constant 0 : index
    %c0_13 = arith.constant 0 : index
    %19 = vector.load %arg10[%c0_10, %c0_11, %c0_12, %c0_13] : memref<4x1x8x8xf32, #tpu.memory_space<vmem>>, vector<1x1x8x8xf32>
    %20 = vector.shape_cast %19 : vector<1x1x8x8xf32> to vector<8x8xf32>
    %21 = vector.shape_cast %18 : vector<8x8xf32> to vector<1x1x8x8xf32>
    tpu.vector_store %arg10[%c0_10, %c0_11, %c0_12, %c0_13], %21 {strides = array<i32>} : memref<4x1x8x8xf32, #tpu.memory_space<vmem>>, vector<1x1x8x8xf32>,
    %c0_14 = arith.constant 0 : index
    %c0_15 = arith.constant 0 : index
    %22 = vector.load %arg12[%c0_14, %c0_15] : memref<8x32xf32, #tpu.memory_space<vmem>>, vector<8x8xf32>
    %cst_16 = arith.constant dense<0.000000e+00> : vector<8x8xf32>
    %23 = tpu.matmul %18, %22, %cst_16 {dimension_numbers = #tpu.dot_dimension_numbers<[1], [0], [0], [1], [0, 0, 1, 1], [], []>} : vector<8x8xf32>, vector<8x8xf32>, vector<8x8xf32> -> vector<8x8xf32>
    %24 = vector.extract_strided_slice %6 {offsets = [0, 8], sizes = [8, 8], strides = [1, 1]} : vector<8x32xf32> to vector<8x8xf32>
    %c0_17 = arith.constant 0 : index
    %c8 = arith.constant 8 : index
    %25 = vector.load %arg11[%c0_17, %c8] : memref<8x32xf32, #tpu.memory_space<vmem>>, vector<8x8xf32>
    %cst_18 = arith.constant dense<0.000000e+00> : vector<8x8xf32>
    %26 = tpu.matmul %24, %25, %cst_18 {dimension_numbers = #tpu.dot_dimension_numbers<[1], [1], [0], [0], [0, 0, 1, 0], [], []>} : vector<8x8xf32>, vector<8x8xf32>, vector<8x8xf32> -> vector<8x8xf32>
    %cst_19 = arith.constant dense<0xFF800000> : vector<8xf32>
    %27 = vector.multi_reduction <maximumf>, %26, %cst_19 [1] : vector<8x8xf32> to vector<8xf32>
    %28 = vector.shape_cast %27 : vector<8xf32> to vector<8x1xf32>
    %29 = vector.broadcast %28 : vector<8x1xf32> to vector<8x8xf32>
    %30 = arith.subf %26, %29 : vector<8x8xf32>
    %31 = math.exp %30 : vector<8x8xf32>
    %cst_20 = arith.constant dense<0.000000e+00> : vector<8xf32>
    %32 = vector.multi_reduction <add>, %31, %cst_20 [1] : vector<8x8xf32> to vector<8xf32>
    %33 = vector.shape_cast %32 : vector<8xf32> to vector<8x1xf32>
    %34 = vector.broadcast %33 : vector<8x1xf32> to vector<8x8xf32>
    %35 = arith.divf %31, %34 : vector<8x8xf32>
    %c1 = arith.constant 1 : index
    %c0_21 = arith.constant 0 : index
    %c0_22 = arith.constant 0 : index
    %c0_23 = arith.constant 0 : index
    %36 = vector.load %arg10[%c1, %c0_21, %c0_22, %c0_23] : memref<4x1x8x8xf32, #tpu.memory_space<vmem>>, vector<1x1x8x8xf32>
    %37 = vector.shape_cast %36 : vector<1x1x8x8xf32> to vector<8x8xf32>
    %38 = vector.shape_cast %35 : vector<8x8xf32> to vector<1x1x8x8xf32>
    tpu.vector_store %arg10[%c1, %c0_21, %c0_22, %c0_23], %38 {strides = array<i32>} : memref<4x1x8x8xf32, #tpu.memory_space<vmem>>, vector<1x1x8x8xf32>,
    %c0_24 = arith.constant 0 : index
    %c8_25 = arith.constant 8 : index
    %39 = vector.load %arg12[%c0_24, %c8_25] : memref<8x32xf32, #tpu.memory_space<vmem>>, vector<8x8xf32>
    %cst_26 = arith.constant dense<0.000000e+00> : vector<8x8xf32>
    %40 = tpu.matmul %35, %39, %cst_26 {dimension_numbers = #tpu.dot_dimension_numbers<[1], [0], [0], [1], [0, 0, 1, 1], [], []>} : vector<8x8xf32>, vector<8x8xf32>, vector<8x8xf32> -> vector<8x8xf32>
    %41 = vector.extract_strided_slice %6 {offsets = [0, 16], sizes = [8, 8], strides = [1, 1]} : vector<8x32xf32> to vector<8x8xf32>
    %c0_27 = arith.constant 0 : index
    %c16 = arith.constant 16 : index
    %42 = vector.load %arg11[%c0_27, %c16] : memref<8x32xf32, #tpu.memory_space<vmem>>, vector<8x8xf32>
    %cst_28 = arith.constant dense<0.000000e+00> : vector<8x8xf32>
    %43 = tpu.matmul %41, %42, %cst_28 {dimension_numbers = #tpu.dot_dimension_numbers<[1], [1], [0], [0], [0, 0, 1, 0], [], []>} : vector<8x8xf32>, vector<8x8xf32>, vector<8x8xf32> -> vector<8x8xf32>
    %cst_29 = arith.constant dense<0xFF800000> : vector<8xf32>
    %44 = vector.multi_reduction <maximumf>, %43, %cst_29 [1] : vector<8x8xf32> to vector<8xf32>
    %45 = vector.shape_cast %44 : vector<8xf32> to vector<8x1xf32>
    %46 = vector.broadcast %45 : vector<8x1xf32> to vector<8x8xf32>
    %47 = arith.subf %43, %46 : vector<8x8xf32>
    %48 = math.exp %47 : vector<8x8xf32>
    %cst_30 = arith.constant dense<0.000000e+00> : vector<8xf32>
    %49 = vector.multi_reduction <add>, %48, %cst_30 [1] : vector<8x8xf32> to vector<8xf32>
    %50 = vector.shape_cast %49 : vector<8xf32> to vector<8x1xf32>
    %51 = vector.broadcast %50 : vector<8x1xf32> to vector<8x8xf32>
    %52 = arith.divf %48, %51 : vector<8x8xf32>
    %c2 = arith.constant 2 : index
    %c0_31 = arith.constant 0 : index
    %c0_32 = arith.constant 0 : index
    %c0_33 = arith.constant 0 : index
    %53 = vector.load %arg10[%c2, %c0_31, %c0_32, %c0_33] : memref<4x1x8x8xf32, #tpu.memory_space<vmem>>, vector<1x1x8x8xf32>
    %54 = vector.shape_cast %53 : vector<1x1x8x8xf32> to vector<8x8xf32>
    %55 = vector.shape_cast %52 : vector<8x8xf32> to vector<1x1x8x8xf32>
    tpu.vector_store %arg10[%c2, %c0_31, %c0_32, %c0_33], %55 {strides = array<i32>} : memref<4x1x8x8xf32, #tpu.memory_space<vmem>>, vector<1x1x8x8xf32>,
    %c0_34 = arith.constant 0 : index
    %c16_35 = arith.constant 16 : index
    %56 = vector.load %arg12[%c0_34, %c16_35] : memref<8x32xf32, #tpu.memory_space<vmem>>, vector<8x8xf32>
    %cst_36 = arith.constant dense<0.000000e+00> : vector<8x8xf32>
    %57 = tpu.matmul %52, %56, %cst_36 {dimension_numbers = #tpu.dot_dimension_numbers<[1], [0], [0], [1], [0, 0, 1, 1], [], []>} : vector<8x8xf32>, vector<8x8xf32>, vector<8x8xf32> -> vector<8x8xf32>
    %58 = vector.extract_strided_slice %6 {offsets = [0, 24], sizes = [8, 8], strides = [1, 1]} : vector<8x32xf32> to vector<8x8xf32>
    %c0_37 = arith.constant 0 : index
    %c24 = arith.constant 24 : index
    %59 = vector.load %arg11[%c0_37, %c24] : memref<8x32xf32, #tpu.memory_space<vmem>>, vector<8x8xf32>
    %cst_38 = arith.constant dense<0.000000e+00> : vector<8x8xf32>
    %60 = tpu.matmul %58, %59, %cst_38 {dimension_numbers = #tpu.dot_dimension_numbers<[1], [1], [0], [0], [0, 0, 1, 0], [], []>} : vector<8x8xf32>, vector<8x8xf32>, vector<8x8xf32> -> vector<8x8xf32>
    %cst_39 = arith.constant dense<0xFF800000> : vector<8xf32>
    %61 = vector.multi_reduction <maximumf>, %60, %cst_39 [1] : vector<8x8xf32> to vector<8xf32>
    %62 = vector.shape_cast %61 : vector<8xf32> to vector<8x1xf32>
    %63 = vector.broadcast %62 : vector<8x1xf32> to vector<8x8xf32>
    %64 = arith.subf %60, %63 : vector<8x8xf32>
    %65 = math.exp %64 : vector<8x8xf32>
    %cst_40 = arith.constant dense<0.000000e+00> : vector<8xf32>
    %66 = vector.multi_reduction <add>, %65, %cst_40 [1] : vector<8x8xf32> to vector<8xf32>
    %67 = vector.shape_cast %66 : vector<8xf32> to vector<8x1xf32>
    %68 = vector.broadcast %67 : vector<8x1xf32> to vector<8x8xf32>
    %69 = arith.divf %65, %68 : vector<8x8xf32>
    %c3 = arith.constant 3 : index
    %c0_41 = arith.constant 0 : index
    %c0_42 = arith.constant 0 : index
    %c0_43 = arith.constant 0 : index
    %70 = vector.load %arg10[%c3, %c0_41, %c0_42, %c0_43] : memref<4x1x8x8xf32, #tpu.memory_space<vmem>>, vector<1x1x8x8xf32>
    %71 = vector.shape_cast %70 : vector<1x1x8x8xf32> to vector<8x8xf32>
    %72 = vector.shape_cast %69 : vector<8x8xf32> to vector<1x1x8x8xf32>
    tpu.vector_store %arg10[%c3, %c0_41, %c0_42, %c0_43], %72 {strides = array<i32>} : memref<4x1x8x8xf32, #tpu.memory_space<vmem>>, vector<1x1x8x8xf32>,
    %c0_44 = arith.constant 0 : index
    %c24_45 = arith.constant 24 : index
    %73 = vector.load %arg12[%c0_44, %c24_45] : memref<8x32xf32, #tpu.memory_space<vmem>>, vector<8x8xf32>
    %cst_46 = arith.constant dense<0.000000e+00> : vector<8x8xf32>
    %74 = tpu.matmul %69, %73, %cst_46 {dimension_numbers = #tpu.dot_dimension_numbers<[1], [0], [0], [1], [0, 0, 1, 1], [], []>} : vector<8x8xf32>, vector<8x8xf32>, vector<8x8xf32> -> vector<8x8xf32>
    %75 = tpu.concatenate %23, %40, %57, %74 in 1 : vector<8x8xf32>, vector<8x8xf32>, vector<8x8xf32>, vector<8x8xf32> -> vector<8x32xf32>
    %c0_47 = arith.constant 0 : index
    %c0_48 = arith.constant 0 : index
    %76 = vector.load %arg8[%c0_47, %c0_48] : memref<32x32xf32, #tpu.memory_space<vmem>>, vector<32x32xf32>
    %cst_49 = arith.constant dense<0.000000e+00> : vector<8x32xf32>
    %77 = tpu.matmul %75, %76, %cst_49 {dimension_numbers = #tpu.dot_dimension_numbers<[1], [0], [0], [1], [0, 0, 1, 1], [], []>} : vector<8x32xf32>, vector<32x32xf32>, vector<8x32xf32> -> vector<8x32xf32>
    %c0_50 = arith.constant 0 : index
    %c0_51 = arith.constant 0 : index
    %c0_52 = arith.constant 0 : index
    %78 = vector.load %arg9[%c0_50, %c0_51, %c0_52] : memref<1x8x32xf32, #tpu.memory_space<vmem>>, vector<1x8x32xf32>
    %79 = vector.shape_cast %78 : vector<1x8x32xf32> to vector<8x32xf32>
    %80 = vector.shape_cast %77 : vector<8x32xf32> to vector<1x8x32xf32>
    tpu.vector_store %arg9[%c0_50, %c0_51, %c0_52], %80 {strides = array<i32>} : memref<1x8x32xf32, #tpu.memory_space<vmem>>, vector<1x8x32xf32>,
    return
  }
  func.func @transform_0(%arg0: i32, %arg1: i32) -> (i32, i32, i32) {
    %c0_i32 = arith.constant 0 : i32
    %c0_i32_0 = arith.constant 0 : i32
    return %arg0, %arg1, %c0_i32 : i32, i32, i32
  }
  func.func @transform_1(%arg0: i32, %arg1: i32) -> (i32, i32, i32) {
    %c0_i32 = arith.constant 0 : i32
    %c0_i32_0 = arith.constant 0 : i32
    %c0_i32_1 = arith.constant 0 : i32
    return %arg0, %c0_i32, %c0_i32_0 : i32, i32, i32
  }
  func.func @transform_2(%arg0: i32, %arg1: i32) -> (i32, i32, i32) {
    %c0_i32 = arith.constant 0 : i32
    %c0_i32_0 = arith.constant 0 : i32
    %c0_i32_1 = arith.constant 0 : i32
    return %arg0, %c0_i32, %c0_i32_0 : i32, i32, i32
  }
  func.func @transform_3(%arg0: i32, %arg1: i32) -> (i32, i32) {
    %c0_i32 = arith.constant 0 : i32
    %c0_i32_0 = arith.constant 0 : i32
    %c0_i32_1 = arith.constant 0 : i32
    return %c0_i32, %c0_i32_0 : i32, i32
  }
  func.func @transform_4(%arg0: i32, %arg1: i32) -> (i32, i32) {
    %c0_i32 = arith.constant 0 : i32
    %c0_i32_0 = arith.constant 0 : i32
    %c0_i32_1 = arith.constant 0 : i32
    return %c0_i32, %c0_i32_0 : i32, i32
  }
  func.func @transform_5(%arg0: i32, %arg1: i32) -> (i32, i32) {
    %c0_i32 = arith.constant 0 : i32
    %c0_i32_0 = arith.constant 0 : i32
    %c0_i32_1 = arith.constant 0 : i32
    return %c0_i32, %c0_i32_0 : i32, i32
  }
  func.func @transform_6(%arg0: i32, %arg1: i32) -> (i32, i32) {
    %c0_i32 = arith.constant 0 : i32
    %c0_i32_0 = arith.constant 0 : i32
    %c0_i32_1 = arith.constant 0 : i32
    return %c0_i32, %c0_i32_0 : i32, i32
  }
  func.func @transform_7(%arg0: i32, %arg1: i32) -> (i32, i32, i32) {
    %c0_i32 = arith.constant 0 : i32
    %c0_i32_0 = arith.constant 0 : i32
    return %arg0, %arg1, %c0_i32 : i32, i32, i32
  }
  func.func @transform_8(%arg0: i32, %arg1: i32) -> (i32, i32, i32, i32) {
    %c0_i32 = arith.constant 0 : i32
    %c0_i32_0 = arith.constant 0 : i32
    %c0_i32_1 = arith.constant 0 : i32
    return %c0_i32, %arg0, %arg1, %c0_i32_0 : i32, i32, i32, i32
  }
}

</mosaic_0001>

<llo_original>
// kernel: tpu_custom_call.1
$region0: #{tpu_custom_call.1}
  #allocation0 [shape = 'u32[]', space=smem, size = 0x4, offset = 0x4, fixed_abs, tag = 'smem constant byte address 0x4 - core index']
  #allocation1 [shape = 'u32[72,128]{1,0:T(1,128)}', space=vmem, size = 0x9000, scoped, tag = 'internal scratch']
  #allocation2 [shape = 'f32[8,32]{1,0:T(8,128)}', space=vmem, size = 0x1000, scoped, tag = 'scratch operand']
  #allocation3 [shape = 'f32[8,32]{1,0:T(8,128)}', space=vmem, size = 0x1000, scoped, tag = 'scratch operand']
  %s0 = inlined_call_operand.hbm [shape: f32[2,8,32], index: 0, kind: input, shape index: {}]
  %s1 = inlined_call_operand.hbm [shape: f32[2,8,32], index: 1, kind: input, shape index: {}]
  %s2 = inlined_call_operand.hbm [shape: f32[2,8,32], index: 2, kind: input, shape index: {}]
  %s3 = inlined_call_operand.hbm [shape: f32[32,32], index: 3, kind: input, shape index: {}]
  %s4 = inlined_call_operand.hbm [shape: f32[32,32], index: 4, kind: input, shape index: {}]
  %s5 = inlined_call_operand.hbm [shape: f32[32,32], index: 5, kind: input, shape index: {}]
  %s6 = inlined_call_operand.hbm [shape: f32[32,32], index: 6, kind: input, shape index: {}]
  %s7 = inlined_call_operand.hbm [shape: f32[2,8,32], index: 7, kind: output, shape index: {0}]
  %s8 = inlined_call_operand.hbm [shape: f32[4,2,8,8], index: 8, kind: output, shape index: {1}]
  %9 = xla_tuple %s7, %s8
  %s10 = sld [smem:[#allocation0]]
  $region101: #{tpu_custom_call.1} parent=0
    _
  %s12 = ssub.s32 1, %s10
  %s13 = scalar_select 0, %s12, %s10
  $region1: #{tpu_custom_call.1} parent=0
    #allocation4 [shape = 'u8[8192]{0}', space=vmem, size = 0x2000, scoped, tag = 'input window, operand 0']
    #allocation5 [shape = 's32[2]{0}', space=sflag, size = 0x8, scoped, tag = 'scoped memory for tpu_custom_call.1']
    #allocation6 [shape = 's32[2]{0}', space=sflag, size = 0x8, scoped, tag = 'scoped memory for tpu_custom_call.1']
    #allocation7 [shape = 'u8[8192]{0}', space=vmem, size = 0x2000, scoped, tag = 'input window, operand 1']
    #allocation8 [shape = 's32[2]{0}', space=sflag, size = 0x8, scoped, tag = 'scoped memory for tpu_custom_call.1']
    #allocation9 [shape = 'u8[8192]{0}', space=vmem, size = 0x2000, scoped, tag = 'input window, operand 2']
    #allocation10 [shape = 'u8[16384]{0}', space=vmem, size = 0x4000, scoped, tag = 'input window, operand 3, single buffered']
    #allocation11 [shape = 's32[1]{0}', space=sflag, size = 0x4, scoped, tag = 'scoped memory for tpu_custom_call.1']
    #allocation12 [shape = 'u8[16384]{0}', space=vmem, size = 0x4000, scoped, tag = 'input window, operand 4, single buffered']
    #allocation13 [shape = 'u8[16384]{0}', space=vmem, size = 0x4000, scoped, tag = 'input window, operand 5, single buffered']
    #allocation14 [shape = 's32[1]{0}', space=sflag, size = 0x4, scoped, tag = 'scoped memory for tpu_custom_call.1']
    #allocation15 [shape = 'u8[16384]{0}', space=vmem, size = 0x4000, scoped, tag = 'input window, operand 6, single buffered']
    #allocation16 [shape = 'u8[8192]{0}', space=vmem, size = 0x2000, scoped, tag = 'output window, operand 0']
    #allocation17 [shape = 'u8[32768]{0}', space=vmem, size = 0x8000, scoped, tag = 'output window, operand 1']
    #allocation18 [shape = 's32[2]{0}', space=sflag, size = 0x8, scoped, tag = 'scoped memory for tpu_custom_call.1']
    %14 = vsyncpa [#allocation5], 0
    %s15 = scalar_lea.sflag [#allocation5], 1
    %16 = vsyncpa %s15, 0
    %17 = vsyncpa [#allocation8], 0
    %s18 = scalar_lea.sflag [#allocation8], 1
    %19 = vsyncpa %s18, 0
    %20 = vsyncpa [#allocation11], 0
    %21 = vsyncpa [#allocation14], 0
    %22 = vsyncpa [#allocation6], 0
    %s23 = scalar_lea.sflag [#allocation6], 1
    %24 = vsyncpa %s23, 0
    %25 = vsyncpa [#allocation18], 0
    %s26 = scalar_lea.sflag [#allocation18], 1
    %27 = vsyncpa %s26, 0
    loop: start=0, step=1, limit=4
    $region2: #{tpu_custom_call.1} parent=1 // loop_pre_header
      _
    $region3: #{tpu_custom_call.1} parent=1 // loop_header
      %s29 = sphi 0, %s33
      %p30 = scmp.ge.s32.totalorder %s29, 4
      %s36 = sphi 0, %s48
      %s37 = sphi 0, %s44
      %s38 = sphi 0, %s36
      %s39 = sphi 0, %s37
      %s40 = sphi 0, %s38
      %s41 = sphi 0, %s39
      %s53 = sphi 0, %s55
      %s56 = sphi 0, %s53
      %s57 = sphi 0, %s56
      %s73 = sphi 0, %s57
      %s79 = sphi 0, %s81
      %s82 = sphi 0, %s79
      %s83 = sphi 0, %s82
      %s99 = sphi 0, %s83
      %s105 = sphi 0, %s107
      %s108 = sphi 0, %s105
      %s109 = sphi 0, %s108
      %s125 = sphi 0, %s109
      %s129 = sphi 0, %s129
      %s131 = sphi 0, %s129
      %s132 = sphi 0, %s131
      %s146 = sphi 0, %s132
      %s150 = sphi 0, %s150
      %s152 = sphi 0, %s150
      %s153 = sphi 0, %s152
      %s167 = sphi 0, %s153
      %s171 = sphi 0, %s171
      %s173 = sphi 0, %s171
      %s174 = sphi 0, %s173
      %s188 = sphi 0, %s174
      %s192 = sphi 0, %s192
      %s194 = sphi 0, %s192
      %s195 = sphi 0, %s194
      %s209 = sphi 0, %s195
      %s217 = sphi 0, %s219
      %s220 = sphi 0, %s217
      %s221 = sphi 0, %s220
      %s237 = sphi 0, %s221
      %s245 = sphi 0, %s247
      %s248 = sphi 0, %s245
      %s249 = sphi 0, %s248
      %s265 = sphi 0, %s249
    $region4: #{tpu_custom_call.1} parent=1 // loop_header_branch
      %32 = sbr.rel (%p30) target = $region8
    $region5: #{tpu_custom_call.1} parent=1 // loop_body
      %s34 = ssub.s32 %s29, 1
      %s35 = ssub.s32 %s29, 2
      %s42 = sadd.s32 1, %s37
      %p43 = scmp.ge.s32.totalorder %s42, 1
      %s44 = scalar_select %p43, 0, %s42
      %s45 = sadd.s32 1, %s36
      %s46 = scalar_select %p43, %s45, %s36
      %p47 = scmp.ge.s32.totalorder %s46, 2
      %s48 = scalar_select %p47, 0, %s46
      %s49 = ssub.s32 %s36, %s48
      %s50 = ssub.s32 %s37, %s44
      %s51 = sor.u32 %s49, %s50
      %p52 = scmp.eq.s32.totalorder %s51, 0
      %s54 = sadd.s32 %s53, 1
      %s55 = scalar_select %p52, %s53, %s54
      %p58 = pneg %p52
      %p59 = scmp.eq.s32.totalorder %s29, 1
      %p60 = por %p58, %p59
      %p61 = scmp.ne.s32.totalorder %s53, %s56
      %p62 = scmp.eq.s32.totalorder %s29, 0
      %p63 = por %p61, %p62
      %p64 = scmp.ne.s32.totalorder %s53, %s56
      %p65 = scmp.eq.s32.totalorder %s34, 1
      %p66 = por %p64, %p65
      %p67 = scmp.ne.s32.totalorder %s56, %s57
      %p68 = scmp.eq.s32.totalorder %s34, 0
      %p69 = por %p67, %p68
      %p70 = scmp.ne.s32.totalorder %s56, %s57
      %p71 = scmp.eq.s32.totalorder %s35, 1
      %p72 = por %p70, %p71
      %p74 = scmp.ne.s32.totalorder %s57, %s73
      %p75 = scmp.eq.s32.totalorder %s35, 0
      %p76 = por %p74, %p75
      %s77 = ssub.s32 %s36, %s48
      %p78 = scmp.eq.s32.totalorder %s77, 0
      %s80 = sadd.s32 %s79, 1
      %s81 = scalar_select %p78, %s79, %s80
      %p84 = pneg %p78
      %p85 = scmp.eq.s32.totalorder %s29, 1
      %p86 = por %p84, %p85
      %p87 = scmp.ne.s32.totalorder %s79, %s82
      %p88 = scmp.eq.s32.totalorder %s29, 0
      %p89 = por %p87, %p88
      %p90 = scmp.ne.s32.totalorder %s79, %s82
      %p91 = scmp.eq.s32.totalorder %s34, 1
      %p92 = por %p90, %p91
      %p93 = scmp.ne.s32.totalorder %s82, %s83
      %p94 = scmp.eq.s32.totalorder %s34, 0
      %p95 = por %p93, %p94
      %p96 = scmp.ne.s32.totalorder %s82, %s83
      %p97 = scmp.eq.s32.totalorder %s35, 1
      %p98 = por %p96, %p97
      %p100 = scmp.ne.s32.totalorder %s83, %s99
      %p101 = scmp.eq.s32.totalorder %s35, 0
      %p102 = por %p100, %p101
      %s103 = ssub.s32 %s36, %s48
      %p104 = scmp.eq.s32.totalorder %s103, 0
      %s106 = sadd.s32 %s105, 1
      %s107 = scalar_select %p104, %s105, %s106
      %p110 = pneg %p104
      %p111 = scmp.eq.s32.totalorder %s29, 1
      %p112 = por %p110, %p111
      %p113 = scmp.ne.s32.totalorder %s105, %s108
      %p114 = scmp.eq.s32.totalorder %s29, 0
      %p115 = por %p113, %p114
      %p116 = scmp.ne.s32.totalorder %s105, %s108
      %p117 = scmp.eq.s32.totalorder %s34, 1
      %p118 = por %p116, %p117
      %p119 = scmp.ne.s32.totalorder %s108, %s109
      %p120 = scmp.eq.s32.totalorder %s34, 0
      %p121 = por %p119, %p120
      %p122 = scmp.ne.s32.totalorder %s108, %s109
      %p123 = scmp.eq.s32.totalorder %s35, 1
      %p124 = por %p122, %p123
      %p126 = scmp.ne.s32.totalorder %s109, %s125
      %p127 = scmp.eq.s32.totalorder %s35, 0
      %p128 = por %p126, %p127
      %s130 = sadd.s32 %s129, 1
      %p133 = scmp.eq.s32.totalorder %s29, 1
      %p134 = scmp.ne.s32.totalorder %s129, %s131
      %p135 = scmp.eq.s32.totalorder %s29, 0
      %p136 = por %p134, %p135
      %p137 = scmp.ne.s32.totalorder %s129, %s131
      %p138 = scmp.eq.s32.totalorder %s34, 1
      %p139 = por %p137, %p138
      %p140 = scmp.ne.s32.totalorder %s131, %s132
      %p141 = scmp.eq.s32.totalorder %s34, 0
      %p142 = por %p140, %p141
      %p143 = scmp.ne.s32.totalorder %s131, %s132
      %p144 = scmp.eq.s32.totalorder %s35, 1
      %p145 = por %p143, %p144
      %p147 = scmp.ne.s32.totalorder %s132, %s146
      %p148 = scmp.eq.s32.totalorder %s35, 0
      %p149 = por %p147, %p148
      %s151 = sadd.s32 %s150, 1
      %p154 = scmp.eq.s32.totalorder %s29, 1
      %p155 = scmp.ne.s32.totalorder %s150, %s152
      %p156 = scmp.eq.s32.totalorder %s29, 0
      %p157 = por %p155, %p156
      %p158 = scmp.ne.s32.totalorder %s150, %s152
      %p159 = scmp.eq.s32.totalorder %s34, 1
      %p160 = por %p158, %p159
      %p161 = scmp.ne.s32.totalorder %s152, %s153
      %p162 = scmp.eq.s32.totalorder %s34, 0
      %p163 = por %p161, %p162
      %p164 = scmp.ne.s32.totalorder %s152, %s153
      %p165 = scmp.eq.s32.totalorder %s35, 1
      %p166 = por %p164, %p165
      %p168 = scmp.ne.s32.totalorder %s153, %s167
      %p169 = scmp.eq.s32.totalorder %s35, 0
      %p170 = por %p168, %p169
      %s172 = sadd.s32 %s171, 1
      %p175 = scmp.eq.s32.totalorder %s29, 1
      %p176 = scmp.ne.s32.totalorder %s171, %s173
      %p177 = scmp.eq.s32.totalorder %s29, 0
      %p178 = por %p176, %p177
      %p179 = scmp.ne.s32.totalorder %s171, %s173
      %p180 = scmp.eq.s32.totalorder %s34, 1
      %p181 = por %p179, %p180
      %p182 = scmp.ne.s32.totalorder %s173, %s174
      %p183 = scmp.eq.s32.totalorder %s34, 0
      %p184 = por %p182, %p183
      %p185 = scmp.ne.s32.totalorder %s173, %s174
      %p186 = scmp.eq.s32.totalorder %s35, 1
      %p187 = por %p185, %p186
      %p189 = scmp.ne.s32.totalorder %s174, %s188
      %p190 = scmp.eq.s32.totalorder %s35, 0
      %p191 = por %p189, %p190
      %s193 = sadd.s32 %s192, 1
      %p196 = scmp.eq.s32.totalorder %s29, 1
      %p197 = scmp.ne.s32.totalorder %s192, %s194
      %p198 = scmp.eq.s32.totalorder %s29, 0
      %p199 = por %p197, %p198
      %p200 = scmp.ne.s32.totalorder %s192, %s194
      %p201 = scmp.eq.s32.totalorder %s34, 1
      %p202 = por %p200, %p201
      %p203 = scmp.ne.s32.totalorder %s194, %s195
      %p204 = scmp.eq.s32.totalorder %s34, 0
      %p205 = por %p203, %p204
      %p206 = scmp.ne.s32.totalorder %s194, %s195
      %p207 = scmp.eq.s32.totalorder %s35, 1
      %p208 = por %p206, %p207
      %p210 = scmp.ne.s32.totalorder %s195, %s209
      %p211 = scmp.eq.s32.totalorder %s35, 0
      %p212 = por %p210, %p211
      %s213 = ssub.s32 %s36, %s48
      %s214 = ssub.s32 %s37, %s44
      %s215 = sor.u32 %s213, %s214
      %p216 = scmp.eq.s32.totalorder %s215, 0
      %s218 = sadd.s32 %s217, 1
      %s219 = scalar_select %p216, %s217, %s218
      %p222 = pneg %p216
      %p223 = scmp.eq.s32.totalorder %s29, 1
      %p224 = por %p222, %p223
      %p225 = scmp.ne.s32.totalorder %s217, %s220
      %p226 = scmp.eq.s32.totalorder %s29, 0
      %p227 = por %p225, %p226
      %p228 = scmp.ne.s32.totalorder %s217, %s220
      %p229 = scmp.eq.s32.totalorder %s34, 1
      %p230 = por %p228, %p229
      %p231 = scmp.ne.s32.totalorder %s220, %s221
      %p232 = scmp.eq.s32.totalorder %s34, 0
      %p233 = por %p231, %p232
      %p234 = scmp.ne.s32.totalorder %s220, %s221
      %p235 = scmp.eq.s32.totalorder %s35, 1
      %p236 = por %p234, %p235
      %p238 = scmp.ne.s32.totalorder %s221, %s237
      %p239 = scmp.eq.s32.totalorder %s35, 0
      %p240 = por %p238, %p239
      %s241 = ssub.s32 %s36, %s48
      %s242 = ssub.s32 %s37, %s44
      %s243 = sor.u32 %s241, %s242
      %p244 = scmp.eq.s32.totalorder %s243, 0
      %s246 = sadd.s32 %s245, 1
      %s247 = scalar_select %p244, %s245, %s246
      %p250 = pneg %p244
      %p251 = scmp.eq.s32.totalorder %s29, 1
      %p252 = por %p250, %p251
      %p253 = scmp.ne.s32.totalorder %s245, %s248
      %p254 = scmp.eq.s32.totalorder %s29, 0
      %p255 = por %p253, %p254
      %p256 = scmp.ne.s32.totalorder %s245, %s248
      %p257 = scmp.eq.s32.totalorder %s34, 1
      %p258 = por %p256, %p257
      %p259 = scmp.ne.s32.totalorder %s248, %s249
      %p260 = scmp.eq.s32.totalorder %s34, 0
      %p261 = por %p259, %p260
      %p262 = scmp.ne.s32.totalorder %s248, %s249
      %p263 = scmp.eq.s32.totalorder %s35, 1
      %p264 = por %p262, %p263
      %p266 = scmp.ne.s32.totalorder %s249, %s265
      %p267 = scmp.eq.s32.totalorder %s35, 0
      %p268 = por %p266, %p267
      %p269 = scmp.le.s32.totalorder 1, %s29
      %p270 = scmp.lt.s32.totalorder %s29, 3
      %p271 = pnand %p269, %p270
      %p272 = pneg %p271
      // Predicated region
      $region9: #{tpu_custom_call.1} parent=5 // pred_check
        _
      $region10: #{tpu_custom_call.1} parent=5 // pred_check_branch
        %274 = sbr.rel (%p271) target = $region12
      $region11: #{tpu_custom_call.1} parent=5 // pred_region
        %s275 = ssub.s32 %s29, 1
        // Predicated region
        $region13: #{tpu_custom_call.1} parent=11 // pred_check
          %p276 = pneg %p142
        $region14: #{tpu_custom_call.1} parent=11 // pred_check_branch
          %278 = sbr.rel (%p276) target = $region16
        $region15: #{tpu_custom_call.1} parent=11 // pred_region
          %280 = vsyncadd [#allocation11], 0
          %s281 = sshll.u32 %s3, 4
          %s282 = int_to_ptr.hbm [resolvable:$true] %s281
          %s283 = sshll.u32 [#allocation10], 4
          %s284 = int_to_ptr.vmem [resolvable:$true] %s283
          %289 = dma.hbm_to_vmem [thread:$0]  %s282, 512, %s284, [#allocation11], 128, 128, 8
        $region16: #{tpu_custom_call.1} parent=11 // pred_fallthru
          _
        // Predicated region
        $region17: #{tpu_custom_call.1} parent=11 // pred_check
          %p290 = pneg %p163
        $region18: #{tpu_custom_call.1} parent=11 // pred_check_branch
          %292 = sbr.rel (%p290) target = $region20
        $region19: #{tpu_custom_call.1} parent=11 // pred_region
          %294 = vsyncadd [#allocation11], 0
          %s295 = sshll.u32 %s4, 4
          %s296 = int_to_ptr.hbm [resolvable:$true] %s295
          %s297 = sshll.u32 [#allocation12], 4
          %s298 = int_to_ptr.vmem [resolvable:$true] %s297
          %303 = dma.hbm_to_vmem [thread:$0]  %s296, 512, %s298, [#allocation11], 128, 128, 8
        $region20: #{tpu_custom_call.1} parent=11 // pred_fallthru
          _
        // Predicated region
        $region21: #{tpu_custom_call.1} parent=11 // pred_check
          %p304 = pneg %p184
        $region22: #{tpu_custom_call.1} parent=11 // pred_check_branch
          %306 = sbr.rel (%p304) target = $region24
        $region23: #{tpu_custom_call.1} parent=11 // pred_region
          %308 = vsyncadd [#allocation14], 0
          %s309 = sshll.u32 %s5, 4
          %s310 = int_to_ptr.hbm [resolvable:$true] %s309
          %s311 = sshll.u32 [#allocation13], 4
          %s312 = int_to_ptr.vmem [resolvable:$true] %s311
          %317 = dma.hbm_to_vmem [thread:$0]  %s310, 512, %s312, [#allocation14], 128, 128, 8
        $region24: #{tpu_custom_call.1} parent=11 // pred_fallthru
          _
        // Predicated region
        $region25: #{tpu_custom_call.1} parent=11 // pred_check
          %p318 = pneg %p205
        $region26: #{tpu_custom_call.1} parent=11 // pred_check_branch
          %320 = sbr.rel (%p318) target = $region28
        $region27: #{tpu_custom_call.1} parent=11 // pred_region
          %322 = vsyncadd [#allocation14], 0
          %s323 = sshll.u32 %s6, 4
          %s324 = int_to_ptr.hbm [resolvable:$true] %s323
          %s325 = sshll.u32 [#allocation15], 4
          %s326 = int_to_ptr.vmem [resolvable:$true] %s325
          %331 = dma.hbm_to_vmem [thread:$0]  %s324, 512, %s326, [#allocation14], 128, 128, 8
        $region28: #{tpu_custom_call.1} parent=11 // pred_fallthru
          _
      $region12: #{tpu_custom_call.1} parent=5 // pred_fallthru
        _
      %p332 = scmp.lt.s32.totalorder %s29, 2
      // Predicated region
      $region29: #{tpu_custom_call.1} parent=5 // pred_check
        %p333 = pneg %p332
      $region30: #{tpu_custom_call.1} parent=5 // pred_check_branch
        %335 = sbr.rel (%p333) target = $region32
      $region31: #{tpu_custom_call.1} parent=5 // pred_region
        // Predicated region
        $region33: #{tpu_custom_call.1} parent=31 // pred_check
          %p336 = pneg %p63
        $region34: #{tpu_custom_call.1} parent=31 // pred_check_branch
          %338 = sbr.rel (%p336) target = $region36
        $region35: #{tpu_custom_call.1} parent=31 // pred_region
          %s339 = sand.u32 %s53, 1
          %s340 = scalar_lea.sflag [#allocation5], %s339
          %s341 = sand.u32 %s53, 1
          %s342 = smul.addr %s341, 8
          %s343 = scalar_lea.vmem [#allocation4], %s342
          %345 = vsyncadd %s340, 0
          %s346 = sadd.s32 %s37, %s36
          %s347 = smul.addr %s346, 8
          %s348 = scalar_lea.hbm %s0, %s347
          %s350 = sshll.u32 %s348, 4
          %s351 = int_to_ptr.hbm [resolvable:$true] %s350
          %s352 = sshll.u32 %s343, 4
          %s353 = int_to_ptr.vmem [resolvable:$true] %s352
          %355 = dma.hbm_to_vmem [thread:$0]  %s351, 128, %s353, %s340
        $region36: #{tpu_custom_call.1} parent=31 // pred_fallthru
          _
        // Predicated region
        $region37: #{tpu_custom_call.1} parent=31 // pred_check
          %p356 = pneg %p89
        $region38: #{tpu_custom_call.1} parent=31 // pred_check_branch
          %358 = sbr.rel (%p356) target = $region40
        $region39: #{tpu_custom_call.1} parent=31 // pred_region
          %s359 = sand.u32 %s29, 1
          %s360 = scalar_lea.sflag [#allocation8], %s359
          %s361 = sand.u32 %s79, 1
          %s362 = smul.addr %s361, 8
          %s363 = scalar_lea.vmem [#allocation7], %s362
          %365 = vsyncadd %s360, 0
          %s366 = smul.addr %s36, 8
          %s367 = scalar_lea.hbm %s1, %s366
          %s369 = sshll.u32 %s367, 4
          %s370 = int_to_ptr.hbm [resolvable:$true] %s369
          %s371 = sshll.u32 %s363, 4
          %s372 = int_to_ptr.vmem [resolvable:$true] %s371
          %374 = dma.hbm_to_vmem [thread:$0]  %s370, 128, %s372, %s360
        $region40: #{tpu_custom_call.1} parent=31 // pred_fallthru
          _
        // Predicated region
        $region41: #{tpu_custom_call.1} parent=31 // pred_check
          %p375 = pneg %p115
        $region42: #{tpu_custom_call.1} parent=31 // pred_check_branch
          %377 = sbr.rel (%p375) target = $region44
        $region43: #{tpu_custom_call.1} parent=31 // pred_region
          %s378 = sand.u32 %s29, 1
          %s379 = scalar_lea.sflag [#allocation8], %s378
          %s380 = sand.u32 %s105, 1
          %s381 = smul.addr %s380, 8
          %s382 = scalar_lea.vmem [#allocation9], %s381
          %384 = vsyncadd %s379, 0
          %s385 = smul.addr %s36, 8
          %s386 = scalar_lea.hbm %s2, %s385
          %s388 = sshll.u32 %s386, 4
          %s389 = int_to_ptr.hbm [resolvable:$true] %s388
          %s390 = sshll.u32 %s382, 4
          %s391 = int_to_ptr.vmem [resolvable:$true] %s390
          %393 = dma.hbm_to_vmem [thread:$0]  %s389, 128, %s391, %s379
        $region44: #{tpu_custom_call.1} parent=31 // pred_fallthru
          _
      $region32: #{tpu_custom_call.1} parent=5 // pred_fallthru
        _
      %p394 = scmp.le.s32.totalorder 1, %s29
      %p395 = scmp.lt.s32.totalorder %s29, 3
      %p396 = pnand %p394, %p395
      %p397 = pneg %p396
      // Predicated region
      $region45: #{tpu_custom_call.1} parent=5 // pred_check
        _
      $region46: #{tpu_custom_call.1} parent=5 // pred_check_branch
        %399 = sbr.rel (%p396) target = $region48
      $region47: #{tpu_custom_call.1} parent=5 // pred_region
        %s400 = ssub.s32 %s29, 1
        %s401 = sand.u32 %s56, 1
        %s402 = scalar_lea.sflag [#allocation5], %s401
        %s403 = sand.u32 %s56, 1
        %s404 = smul.addr %s403, 8
        %s405 = scalar_lea.vmem [#allocation4], %s404
        // Predicated region
        $region49: #{tpu_custom_call.1} parent=47 // pred_check
          %p406 = pneg %p69
        $region50: #{tpu_custom_call.1} parent=47 // pred_check_branch
          %408 = sbr.rel (%p406) target = $region52
        $region51: #{tpu_custom_call.1} parent=47 // pred_region
          %410 = dma.done %s402, 128
        $region52: #{tpu_custom_call.1} parent=47 // pred_fallthru
          _
        %s411 = sand.u32 %s34, 1
        %s412 = scalar_lea.sflag [#allocation8], %s411
        %s413 = sand.u32 %s82, 1
        %s414 = smul.addr %s413, 8
        %s415 = scalar_lea.vmem [#allocation7], %s414
        // Predicated region
        $region53: #{tpu_custom_call.1} parent=47 // pred_check
          %p416 = pneg %p95
        $region54: #{tpu_custom_call.1} parent=47 // pred_check_branch
          %418 = sbr.rel (%p416) target = $region56
        $region55: #{tpu_custom_call.1} parent=47 // pred_region
          %420 = dma.done %s412, 128
        $region56: #{tpu_custom_call.1} parent=47 // pred_fallthru
          _
        %s421 = sand.u32 %s34, 1
        %s422 = scalar_lea.sflag [#allocation8], %s421
        %s423 = sand.u32 %s108, 1
        %s424 = smul.addr %s423, 8
        %s425 = scalar_lea.vmem [#allocation9], %s424
        // Predicated region
        $region57: #{tpu_custom_call.1} parent=47 // pred_check
          %p426 = pneg %p121
        $region58: #{tpu_custom_call.1} parent=47 // pred_check_branch
          %428 = sbr.rel (%p426) target = $region60
        $region59: #{tpu_custom_call.1} parent=47 // pred_region
          %430 = dma.done %s422, 128
        $region60: #{tpu_custom_call.1} parent=47 // pred_fallthru
          _
        // Predicated region
        $region61: #{tpu_custom_call.1} parent=47 // pred_check
          %p431 = pneg %p142
        $region62: #{tpu_custom_call.1} parent=47 // pred_check_branch
          %433 = sbr.rel (%p431) target = $region64
        $region63: #{tpu_custom_call.1} parent=47 // pred_region
          %435 = dma.done [#allocation11], 512
        $region64: #{tpu_custom_call.1} parent=47 // pred_fallthru
          _
        // Predicated region
        $region65: #{tpu_custom_call.1} parent=47 // pred_check
          %p436 = pneg %p163
        $region66: #{tpu_custom_call.1} parent=47 // pred_check_branch
          %438 = sbr.rel (%p436) target = $region68
        $region67: #{tpu_custom_call.1} parent=47 // pred_region
          %440 = dma.done [#allocation11], 512
        $region68: #{tpu_custom_call.1} parent=47 // pred_fallthru
          _
        // Predicated region
        $region69: #{tpu_custom_call.1} parent=47 // pred_check
          %p441 = pneg %p184
        $region70: #{tpu_custom_call.1} parent=47 // pred_check_branch
          %443 = sbr.rel (%p441) target = $region72
        $region71: #{tpu_custom_call.1} parent=47 // pred_region
          %445 = dma.done [#allocation14], 512
        $region72: #{tpu_custom_call.1} parent=47 // pred_fallthru
          _
        // Predicated region
        $region73: #{tpu_custom_call.1} parent=47 // pred_check
          %p446 = pneg %p205
        $region74: #{tpu_custom_call.1} parent=47 // pred_check_branch
          %448 = sbr.rel (%p446) target = $region76
        $region75: #{tpu_custom_call.1} parent=47 // pred_region
          %450 = dma.done [#allocation14], 512
        $region76: #{tpu_custom_call.1} parent=47 // pred_fallthru
          _
        %s451 = sand.u32 %s56, 1
        %s452 = scalar_lea.sflag [#allocation5], %s451
        %s453 = sand.u32 %s56, 1
        %s454 = smul.addr %s453, 8
        %s455 = scalar_lea.vmem [#allocation4], %s454
        %p456 = pneg %p69
        %p457 = pneg %p66
        %s458 = sand.u32 %s34, 1
        %s459 = scalar_lea.sflag [#allocation8], %s458
        %s460 = sand.u32 %s82, 1
        %s461 = smul.addr %s460, 8
        %s462 = scalar_lea.vmem [#allocation7], %s461
        %p463 = pneg %p95
        %p464 = pneg %p92
        %s465 = sand.u32 %s34, 1
        %s466 = scalar_lea.sflag [#allocation8], %s465
        %s467 = sand.u32 %s108, 1
        %s468 = smul.addr %s467, 8
        %s469 = scalar_lea.vmem [#allocation9], %s468
        %p470 = pneg %p121
        %p471 = pneg %p118
        %p472 = pneg %p142
        %p473 = pneg %p139
        %p474 = pneg %p163
        %p475 = pneg %p160
        %p476 = pneg %p184
        %p477 = pneg %p181
        %p478 = pneg %p205
        %p479 = pneg %p202
        %p480 = pneg %p233
        %p481 = pneg %p230
        %s482 = sand.u32 %s220, 1
        %s483 = scalar_lea.sflag [#allocation6], %s482
        %s484 = sand.u32 %s220, 1
        %s485 = smul.addr %s484, 8
        %s486 = scalar_lea.vmem [#allocation16], %s485
        %p487 = pneg %p261
        %p488 = pneg %p258
        %s489 = sand.u32 %s248, 1
        %s490 = scalar_lea.sflag [#allocation18], %s489
        %s491 = sand.u32 %s248, 1
        %s492 = smul.addr %s491, 32
        %s493 = scalar_lea.vmem [#allocation17], %s492
        %p494 = scmp.eq.s32.totalorder %s39, 0
        // Predicated region
        $region77: #{tpu_custom_call.1} parent=47 // pred_check
          %p495 = pneg %p494
        $region78: #{tpu_custom_call.1} parent=47 // pred_check_branch
          %497 = sbr.rel (%p495) target = $region80
        $region79: #{tpu_custom_call.1} parent=47 // pred_region
          %v498 = vld [vmem:[%s415] sm:$0xff]
          %v499 = vld [vmem:[#allocation12] sm:$0xff]
          %v500 = vld [vmem:[#allocation12 + $0x8] sm:$0xff]
          %v501 = vld [vmem:[#allocation12 + $0x10] sm:$0xff]
          %v502 = vld [vmem:[#allocation12 + $0x18] sm:$0xff]
          %vm503 = vcmask 261120
          %v505 = vsel %vm503, %v498, 0
          %507 = vmatpush.msra.mxu0 0.0
          %508 = vmatpush.msra.mxu0 0.0
          %509 = vmatpush.msra.mxu0 0.0
          %510 = vmatpush.msra.mxu0 0.0
          %511 = vmatpush.msra.mxu0 0.0
          %512 = vmatpush.msra.mxu0 0.0
          %513 = vmatpush.msra.mxu0 0.0
          %514 = vmatpush.msra.mxu0 0.0
          %515 = vmatpush.msra.mxu0 0.0
          %516 = vmatpush.msra.mxu0 0.0
          %517 = vmatpush.msra.mxu0 0.0
          %518 = vmatpush.msra.mxu0 0.0
          %519 = vmatpush.msra.mxu0 %v502
          %520 = vmatpush.msra.mxu0 %v501
          %521 = vmatpush.msra.mxu0 %v500
          %522 = vmatpush.msra.mxu0 %v499
          %523 = vmatmul.f32.gmra.mxu0 %v505
          %v524 = vpop.f32.mrf.mxu0
          %v525 = vadd.f32 0.0, %v524
          %526 = vdwg.mxu0
          %527 = vst.msk [vmem:[#allocation2] sm:$0xff] %vm503, %v525
          %v528 = vld [vmem:[%s425] sm:$0xff]
          %v529 = vld [vmem:[#allocation13] sm:$0xff]
          %v530 = vld [vmem:[#allocation13 + $0x8] sm:$0xff]
          %v531 = vld [vmem:[#allocation13 + $0x10] sm:$0xff]
          %v532 = vld [vmem:[#allocation13 + $0x18] sm:$0xff]
          %v534 = vsel %vm503, %v528, 0
          %536 = vmatpush.msra.mxu0 0.0
          %537 = vmatpush.msra.mxu0 0.0
          %538 = vmatpush.msra.mxu0 0.0
          %539 = vmatpush.msra.mxu0 0.0
          %540 = vmatpush.msra.mxu0 0.0
          %541 = vmatpush.msra.mxu0 0.0
          %542 = vmatpush.msra.mxu0 0.0
          %543 = vmatpush.msra.mxu0 0.0
          %544 = vmatpush.msra.mxu0 0.0
          %545 = vmatpush.msra.mxu0 0.0
          %546 = vmatpush.msra.mxu0 0.0
          %547 = vmatpush.msra.mxu0 0.0
          %548 = vmatpush.msra.mxu0 %v532
          %549 = vmatpush.msra.mxu0 %v531
          %550 = vmatpush.msra.mxu0 %v530
          %551 = vmatpush.msra.mxu0 %v529
          %552 = vmatmul.f32.gmra.mxu0 %v534
          %v553 = vpop.f32.mrf.mxu0
          %v554 = vadd.f32 0.0, %v553
          %555 = vdwg.mxu0
          %556 = vst.msk [vmem:[#allocation3] sm:$0xff] %vm503, %v554
        $region80: #{tpu_custom_call.1} parent=47 // pred_fallthru
          _
        %v557 = vld [vmem:[%s405] sm:$0xff]
        %v558 = vld [vmem:[#allocation10] sm:$0xff]
        %v559 = vld [vmem:[#allocation10 + $0x8] sm:$0xff]
        %v560 = vld [vmem:[#allocation10 + $0x10] sm:$0xff]
        %v561 = vld [vmem:[#allocation10 + $0x18] sm:$0xff]
        %vm562 = vcmask 261120
        %v564 = vsel %vm562, %v557, 0
        %566 = vmatpush.msra.mxu0 0.0
        %567 = vmatpush.msra.mxu0 0.0
        %568 = vmatpush.msra.mxu0 0.0
        %569 = vmatpush.msra.mxu0 0.0
        %570 = vmatpush.msra.mxu0 0.0
        %571 = vmatpush.msra.mxu0 0.0
        %572 = vmatpush.msra.mxu0 0.0
        %573 = vmatpush.msra.mxu0 0.0
        %574 = vmatpush.msra.mxu0 0.0
        %575 = vmatpush.msra.mxu0 0.0
        %576 = vmatpush.msra.mxu0 0.0
        %577 = vmatpush.msra.mxu0 0.0
        %578 = vmatpush.msra.mxu0 %v561
        %579 = vmatpush.msra.mxu0 %v560
        %580 = vmatpush.msra.mxu0 %v559
        %581 = vmatpush.msra.mxu0 %v558
        %582 = vmatmul.f32.gmra.mxu0 %v564
        %v583 = vpop.f32.mrf.mxu0
        %v584 = vadd.f32 0.0, %v583
        %585 = vdwg.mxu0
        %v586 = vld [vmem:[#allocation2] sm:$0xff]
        %vm587 = vcmask 64512
        %v589 = vsel %vm587, %v584, 0
        %v592 = vsel %vm587, %v586, 0
        %594 = vmatpush.xpose.msra.mxu0 0.0
        %595 = vmatpush.xpose.msra.mxu0 0.0
        %596 = vmatpush.xpose.msra.mxu0 0.0
        %597 = vmatpush.xpose.msra.mxu0 0.0
        %598 = vmatpush.xpose.msra.mxu0 0.0
        %599 = vmatpush.xpose.msra.mxu0 0.0
        %600 = vmatpush.xpose.msra.mxu0 0.0
        %601 = vmatpush.xpose.msra.mxu0 0.0
        %602 = vmatpush.xpose.msra.mxu0 0.0
        %603 = vmatpush.xpose.msra.mxu0 0.0
        %604 = vmatpush.xpose.msra.mxu0 0.0
        %605 = vmatpush.xpose.msra.mxu0 0.0
        %606 = vmatpush.xpose.msra.mxu0 0.0
        %607 = vmatpush.xpose.msra.mxu0 0.0
        %608 = vmatpush.xpose.msra.mxu0 0.0
        %609 = vmatpush.xpose.msra.mxu0 %v592
        %610 = vmatmul.f32.gmra.mxu0 %v589
        %v611 = vpop.f32.mrf.mxu0
        %v612 = vadd.f32 0.0, %v611
        %613 = vdwg.mxu0
        %v614 = vsel %vm587, %v612, -inf
        %615 = vmax.xlane.f32.xlu0 %v614
        %v616 = vpop.xlane.xlu0 %615
        %v617 = vsub.f32 %v612, %v616
        %v618 = vmul.f32 %v617, 1.442695
        %v619 = vpow.pop %v618
        %v620 = vsel %vm587, %v619, 0.0
        %621 = vadd.xlane.f32.xlu0 %v620
        %v622 = vpop.xlane.xlu0 %621
        %v623 = vrcp.pop %v622
        %v624 = vmul.f32 %v622, %v623
        %v625 = vsub.f32 1.0, %v624
        %v626 = vmul.f32 %v623, %v625
        %v627 = vadd.f32 %v623, %v626
        %vm628 = vweird.f32 %v622
        %vm629 = vweird.f32 %v623
        %vm630 = vmor %vm628, %vm629
        %v631 = vsel %vm630, %v623, %v627
        %v632 = vand.u32 2147483647, %v622
        %vm633 = vcmp.eq.f32.partialorder %v632, 8.507059e+37
        %v634 = vand.u32 %v622, 2147483648
        %v635 = vor.u32 1.1754944e-38, %v634
        %v636 = vsel %vm633, %v635, %v631
        %v637 = vmul.f32 %v619, %v636
        %638 = vst.msk [vmem:[%s493] sm:$0xff] %vm587, %v637
        %v639 = vld [vmem:[#allocation3] sm:$0xff]
        %v641 = vsel %vm587, %v637, 0
        %643 = vmatpush.msra.mxu0 0.0
        %644 = vmatpush.msra.mxu0 0.0
        %645 = vmatpush.msra.mxu0 0.0
        %646 = vmatpush.msra.mxu0 0.0
        %647 = vmatpush.msra.mxu0 0.0
        %648 = vmatpush.msra.mxu0 0.0
        %649 = vmatpush.msra.mxu0 0.0
        %650 = vmatpush.msra.mxu0 0.0
        %651 = vmatpush.msra.mxu0 0.0
        %652 = vmatpush.msra.mxu0 0.0
        %653 = vmatpush.msra.mxu0 0.0
        %654 = vmatpush.msra.mxu0 0.0
        %655 = vmatpush.msra.mxu0 0.0
        %656 = vmatpush.msra.mxu0 0.0
        %657 = vmatpush.msra.mxu0 0.0
        %658 = vmatpush.msra.mxu0 %v639
        %659 = vmatmul.f32.gmra.mxu0 %v641
        %v660 = vpop.f32.mrf.mxu0
        %v661 = vadd.f32 0.0, %v660
        %662 = vdwg.mxu0
        %v663 = vld [vmem:[#allocation2] sm:$0xff]
        %664 = vrot.lane.b32.xlu0 %v584, 120
        %v665 = vpop.permute.xlu0 %664
        %667 = vrot.lane.b32.xlu0 %v663, 120
        %v668 = vpop.permute.xlu0 %667
        %v669 = vsel %vm587, %v665, 0
        %v671 = vsel %vm587, %v668, 0
        %673 = vmatpush.xpose.msra.mxu0 0.0
        %674 = vmatpush.xpose.msra.mxu0 0.0
        %675 = vmatpush.xpose.msra.mxu0 0.0
        %676 = vmatpush.xpose.msra.mxu0 0.0
        %677 = vmatpush.xpose.msra.mxu0 0.0
        %678 = vmatpush.xpose.msra.mxu0 0.0
        %679 = vmatpush.xpose.msra.mxu0 0.0
        %680 = vmatpush.xpose.msra.mxu0 0.0
        %681 = vmatpush.xpose.msra.mxu0 0.0
        %682 = vmatpush.xpose.msra.mxu0 0.0
        %683 = vmatpush.xpose.msra.mxu0 0.0
        %684 = vmatpush.xpose.msra.mxu0 0.0
        %685 = vmatpush.xpose.msra.mxu0 0.0
        %686 = vmatpush.xpose.msra.mxu0 0.0
        %687 = vmatpush.xpose.msra.mxu0 0.0
        %688 = vmatpush.xpose.msra.mxu0 %v671
        %689 = vmatmul.f32.gmra.mxu0 %v669
        %v690 = vpop.f32.mrf.mxu0
        %v691 = vadd.f32 0.0, %v690
        %692 = vdwg.mxu0
        %v693 = vsel %vm587, %v691, -inf
        %694 = vmax.xlane.f32.xlu0 %v693
        %v695 = vpop.xlane.xlu0 %694
        %v696 = vsub.f32 %v691, %v695
        %v697 = vmul.f32 %v696, 1.442695
        %v698 = vpow.pop %v697
        %v699 = vsel %vm587, %v698, 0.0
        %700 = vadd.xlane.f32.xlu0 %v699
        %v701 = vpop.xlane.xlu0 %700
        %v702 = vrcp.pop %v701
        %v703 = vmul.f32 %v701, %v702
        %v704 = vsub.f32 1.0, %v703
        %v705 = vmul.f32 %v702, %v704
        %v706 = vadd.f32 %v702, %v705
        %vm707 = vweird.f32 %v701
        %vm708 = vweird.f32 %v702
        %vm709 = vmor %vm707, %vm708
        %v710 = vsel %vm709, %v702, %v706
        %v711 = vand.u32 2147483647, %v701
        %vm712 = vcmp.eq.f32.partialorder %v711, 8.507059e+37
        %v713 = vand.u32 %v701, 2147483648
        %v714 = vor.u32 1.1754944e-38, %v713
        %v715 = vsel %vm712, %v714, %v710
        %v716 = vmul.f32 %v698, %v715
        %s717 = scalar_lea.vmem %s493, 8 [#allocation17]
        %718 = vst.msk [vmem:[%s717] sm:$0xff] %vm587, %v716
        %v719 = vld [vmem:[#allocation3] sm:$0xff]
        %721 = vrot.lane.b32.xlu0 %v719, 120
        %v722 = vpop.permute.xlu0 %721
        %v725 = vsel %vm587, %v716, 0
        %727 = vmatpush.msra.mxu0 0.0
        %728 = vmatpush.msra.mxu0 0.0
        %729 = vmatpush.msra.mxu0 0.0
        %730 = vmatpush.msra.mxu0 0.0
        %731 = vmatpush.msra.mxu0 0.0
        %732 = vmatpush.msra.mxu0 0.0
        %733 = vmatpush.msra.mxu0 0.0
        %734 = vmatpush.msra.mxu0 0.0
        %735 = vmatpush.msra.mxu0 0.0
        %736 = vmatpush.msra.mxu0 0.0
        %737 = vmatpush.msra.mxu0 0.0
        %738 = vmatpush.msra.mxu0 0.0
        %739 = vmatpush.msra.mxu0 0.0
        %740 = vmatpush.msra.mxu0 0.0
        %741 = vmatpush.msra.mxu0 0.0
        %742 = vmatpush.msra.mxu0 %v722
        %743 = vmatmul.f32.gmra.mxu0 %v725
        %v744 = vpop.f32.mrf.mxu0
        %v745 = vadd.f32 0.0, %v744
        %746 = vdwg.mxu0
        %v747 = vld [vmem:[#allocation2] sm:$0xff]
        %748 = vrot.lane.b32.xlu0 %v584, 112
        %v749 = vpop.permute.xlu0 %748
        %751 = vrot.lane.b32.xlu0 %v747, 112
        %v752 = vpop.permute.xlu0 %751
        %v753 = vsel %vm587, %v749, 0
        %v755 = vsel %vm587, %v752, 0
        %757 = vmatpush.xpose.msra.mxu0 0.0
        %758 = vmatpush.xpose.msra.mxu0 0.0
        %759 = vmatpush.xpose.msra.mxu0 0.0
        %760 = vmatpush.xpose.msra.mxu0 0.0
        %761 = vmatpush.xpose.msra.mxu0 0.0
        %762 = vmatpush.xpose.msra.mxu0 0.0
        %763 = vmatpush.xpose.msra.mxu0 0.0
        %764 = vmatpush.xpose.msra.mxu0 0.0
        %765 = vmatpush.xpose.msra.mxu0 0.0
        %766 = vmatpush.xpose.msra.mxu0 0.0
        %767 = vmatpush.xpose.msra.mxu0 0.0
        %768 = vmatpush.xpose.msra.mxu0 0.0
        %769 = vmatpush.xpose.msra.mxu0 0.0
        %770 = vmatpush.xpose.msra.mxu0 0.0
        %771 = vmatpush.xpose.msra.mxu0 0.0
        %772 = vmatpush.xpose.msra.mxu0 %v755
        %773 = vmatmul.f32.gmra.mxu0 %v753
        %v774 = vpop.f32.mrf.mxu0
        %v775 = vadd.f32 0.0, %v774
        %776 = vdwg.mxu0
        %v777 = vsel %vm587, %v775, -inf
        %778 = vmax.xlane.f32.xlu0 %v777
        %v779 = vpop.xlane.xlu0 %778
        %v780 = vsub.f32 %v775, %v779
        %v781 = vmul.f32 %v780, 1.442695
        %v782 = vpow.pop %v781
        %v783 = vsel %vm587, %v782, 0.0
        %784 = vadd.xlane.f32.xlu0 %v783
        %v785 = vpop.xlane.xlu0 %784
        %v786 = vrcp.pop %v785
        %v787 = vmul.f32 %v785, %v786
        %v788 = vsub.f32 1.0, %v787
        %v789 = vmul.f32 %v786, %v788
        %v790 = vadd.f32 %v786, %v789
        %vm791 = vweird.f32 %v785
        %vm792 = vweird.f32 %v786
        %vm793 = vmor %vm791, %vm792
        %v794 = vsel %vm793, %v786, %v790
        %v795 = vand.u32 2147483647, %v785
        %vm796 = vcmp.eq.f32.partialorder %v795, 8.507059e+37
        %v797 = vand.u32 %v785, 2147483648
        %v798 = vor.u32 1.1754944e-38, %v797
        %v799 = vsel %vm796, %v798, %v794
        %v800 = vmul.f32 %v782, %v799
        %s801 = scalar_lea.vmem %s493, 16 [#allocation17]
        %802 = vst.msk [vmem:[%s801] sm:$0xff] %vm587, %v800
        %v803 = vld [vmem:[#allocation3] sm:$0xff]
        %805 = vrot.lane.b32.xlu0 %v803, 112
        %v806 = vpop.permute.xlu0 %805
        %v809 = vsel %vm587, %v800, 0
        %811 = vmatpush.msra.mxu0 0.0
        %812 = vmatpush.msra.mxu0 0.0
        %813 = vmatpush.msra.mxu0 0.0
        %814 = vmatpush.msra.mxu0 0.0
        %815 = vmatpush.msra.mxu0 0.0
        %816 = vmatpush.msra.mxu0 0.0
        %817 = vmatpush.msra.mxu0 0.0
        %818 = vmatpush.msra.mxu0 0.0
        %819 = vmatpush.msra.mxu0 0.0
        %820 = vmatpush.msra.mxu0 0.0
        %821 = vmatpush.msra.mxu0 0.0
        %822 = vmatpush.msra.mxu0 0.0
        %823 = vmatpush.msra.mxu0 0.0
        %824 = vmatpush.msra.mxu0 0.0
        %825 = vmatpush.msra.mxu0 0.0
        %826 = vmatpush.msra.mxu0 %v806
        %827 = vmatmul.f32.gmra.mxu0 %v809
        %v828 = vpop.f32.mrf.mxu0
        %v829 = vadd.f32 0.0, %v828
        %830 = vdwg.mxu0
        %v831 = vld [vmem:[#allocation2] sm:$0xff]
        %832 = vrot.lane.b32.xlu0 %v584, 104
        %v833 = vpop.permute.xlu0 %832
        %835 = vrot.lane.b32.xlu0 %v831, 104
        %v836 = vpop.permute.xlu0 %835
        %v837 = vsel %vm587, %v833, 0
        %v839 = vsel %vm587, %v836, 0
        %841 = vmatpush.xpose.msra.mxu0 0.0
        %842 = vmatpush.xpose.msra.mxu0 0.0
        %843 = vmatpush.xpose.msra.mxu0 0.0
        %844 = vmatpush.xpose.msra.mxu0 0.0
        %845 = vmatpush.xpose.msra.mxu0 0.0
        %846 = vmatpush.xpose.msra.mxu0 0.0
        %847 = vmatpush.xpose.msra.mxu0 0.0
        %848 = vmatpush.xpose.msra.mxu0 0.0
        %849 = vmatpush.xpose.msra.mxu0 0.0
        %850 = vmatpush.xpose.msra.mxu0 0.0
        %851 = vmatpush.xpose.msra.mxu0 0.0
        %852 = vmatpush.xpose.msra.mxu0 0.0
        %853 = vmatpush.xpose.msra.mxu0 0.0
        %854 = vmatpush.xpose.msra.mxu0 0.0
        %855 = vmatpush.xpose.msra.mxu0 0.0
        %856 = vmatpush.xpose.msra.mxu0 %v839
        %857 = vmatmul.f32.gmra.mxu0 %v837
        %v858 = vpop.f32.mrf.mxu0
        %v859 = vadd.f32 0.0, %v858
        %860 = vdwg.mxu0
        %v861 = vsel %vm587, %v859, -inf
        %862 = vmax.xlane.f32.xlu0 %v861
        %v863 = vpop.xlane.xlu0 %862
        %v864 = vsub.f32 %v859, %v863
        %v865 = vmul.f32 %v864, 1.442695
        %v866 = vpow.pop %v865
        %v867 = vsel %vm587, %v866, 0.0
        %868 = vadd.xlane.f32.xlu0 %v867
        %v869 = vpop.xlane.xlu0 %868
        %v870 = vrcp.pop %v869
        %v871 = vmul.f32 %v869, %v870
        %v872 = vsub.f32 1.0, %v871
        %v873 = vmul.f32 %v870, %v872
        %v874 = vadd.f32 %v870, %v873
        %vm875 = vweird.f32 %v869
        %vm876 = vweird.f32 %v870
        %vm877 = vmor %vm875, %vm876
        %v878 = vsel %vm877, %v870, %v874
        %v879 = vand.u32 2147483647, %v869
        %vm880 = vcmp.eq.f32.partialorder %v879, 8.507059e+37
        %v881 = vand.u32 %v869, 2147483648
        %v882 = vor.u32 1.1754944e-38, %v881
        %v883 = vsel %vm880, %v882, %v878
        %v884 = vmul.f32 %v866, %v883
        %s885 = scalar_lea.vmem %s493, 24 [#allocation17]
        %886 = vst.msk [vmem:[%s885] sm:$0xff] %vm587, %v884
        %v887 = vld [vmem:[#allocation3] sm:$0xff]
        %889 = vrot.lane.b32.xlu0 %v887, 104
        %v890 = vpop.permute.xlu0 %889
        %v893 = vsel %vm587, %v884, 0
        %895 = vmatpush.msra.mxu0 0.0
        %896 = vmatpush.msra.mxu0 0.0
        %897 = vmatpush.msra.mxu0 0.0
        %898 = vmatpush.msra.mxu0 0.0
        %899 = vmatpush.msra.mxu0 0.0
        %900 = vmatpush.msra.mxu0 0.0
        %901 = vmatpush.msra.mxu0 0.0
        %902 = vmatpush.msra.mxu0 0.0
        %903 = vmatpush.msra.mxu0 0.0
        %904 = vmatpush.msra.mxu0 0.0
        %905 = vmatpush.msra.mxu0 0.0
        %906 = vmatpush.msra.mxu0 0.0
        %907 = vmatpush.msra.mxu0 0.0
        %908 = vmatpush.msra.mxu0 0.0
        %909 = vmatpush.msra.mxu0 0.0
        %910 = vmatpush.msra.mxu0 %v890
        %911 = vmatmul.f32.gmra.mxu0 %v893
        %v912 = vpop.f32.mrf.mxu0
        %v913 = vadd.f32 0.0, %v912
        %914 = vdwg.mxu0
        %916 = vrot.lane.b32.xlu0 %v745, 8
        %v917 = vpop.permute.xlu0 %916
        %920 = vrot.lane.b32.xlu0 %v829, 16
        %v921 = vpop.permute.xlu0 %920
        %924 = vrot.lane.b32.xlu0 %v913, 24
        %v925 = vpop.permute.xlu0 %924
        %v927 = vsel %vm587, %v661, %v917
        %vm928 = vcmask 130048
        %v929 = vsel %vm928, %v927, %v921
        %vm930 = vcmask 195584
        %v931 = vsel %vm930, %v929, %v925
        %v932 = vld [vmem:[#allocation15] sm:$0xff]
        %v933 = vld [vmem:[#allocation15 + $0x8] sm:$0xff]
        %v934 = vld [vmem:[#allocation15 + $0x10] sm:$0xff]
        %v935 = vld [vmem:[#allocation15 + $0x18] sm:$0xff]
        %v937 = vsel %vm562, %v931, 0
        %939 = vmatpush.msra.mxu0 0.0
        %940 = vmatpush.msra.mxu0 0.0
        %941 = vmatpush.msra.mxu0 0.0
        %942 = vmatpush.msra.mxu0 0.0
        %943 = vmatpush.msra.mxu0 0.0
        %944 = vmatpush.msra.mxu0 0.0
        %945 = vmatpush.msra.mxu0 0.0
        %946 = vmatpush.msra.mxu0 0.0
        %947 = vmatpush.msra.mxu0 0.0
        %948 = vmatpush.msra.mxu0 0.0
        %949 = vmatpush.msra.mxu0 0.0
        %950 = vmatpush.msra.mxu0 0.0
        %951 = vmatpush.msra.mxu0 %v935
        %952 = vmatpush.msra.mxu0 %v934
        %953 = vmatpush.msra.mxu0 %v933
        %954 = vmatpush.msra.mxu0 %v932
        %955 = vmatmul.f32.gmra.mxu0 %v937
        %v956 = vpop.f32.mrf.mxu0
        %v957 = vadd.f32 0.0, %v956
        %958 = vdwg.mxu0
        %959 = vst.msk [vmem:[%s486] sm:$0xff] %vm562, %v957
        %s960 = sand.u32 %s220, 1
        %s961 = scalar_lea.sflag [#allocation6], %s960
        %s962 = sand.u32 %s220, 1
        %s963 = smul.addr %s962, 8
        %s964 = scalar_lea.vmem [#allocation16], %s963
        %s965 = sand.u32 %s248, 1
        %s966 = scalar_lea.sflag [#allocation18], %s965
        %s967 = sand.u32 %s248, 1
        %s968 = smul.addr %s967, 32
        %s969 = scalar_lea.vmem [#allocation17], %s968
        // Predicated region
        $region81: #{tpu_custom_call.1} parent=47 // pred_check
          %p970 = pneg %p230
        $region82: #{tpu_custom_call.1} parent=47 // pred_check_branch
          %972 = sbr.rel (%p970) target = $region84
        $region83: #{tpu_custom_call.1} parent=47 // pred_region
          %974 = vsyncadd %s961, 0
          %s975 = sadd.s32 %s39, %s38
          %s976 = smul.addr %s975, 8
          %s977 = scalar_lea.hbm %s7, %s976
          %s979 = sshll.u32 %s964, 4
          %s980 = int_to_ptr.vmem [resolvable:$true] %s979
          %s981 = sshll.u32 %s977, 4
          %s982 = int_to_ptr.hbm [resolvable:$true] %s981
          %984 = dma.vmem_to_hbm [thread:$0]  %s980, 128, %s982, %s961
        $region84: #{tpu_custom_call.1} parent=47 // pred_fallthru
          _
        // Predicated region
        $region85: #{tpu_custom_call.1} parent=47 // pred_check
          %p985 = pneg %p258
        $region86: #{tpu_custom_call.1} parent=47 // pred_check_branch
          %987 = sbr.rel (%p985) target = $region88
        $region87: #{tpu_custom_call.1} parent=47 // pred_region
          %989 = vsyncadd %s966, 0
          %s990 = sadd.s32 %s39, %s38
          %s991 = smul.addr %s990, 8
          %s992 = scalar_lea.hbm %s8, %s991
          %s993 = sshll.u32 %s969, 4
          %s994 = int_to_ptr.vmem [resolvable:$true] %s993
          %s995 = sshll.u32 %s992, 4
          %s996 = int_to_ptr.hbm [resolvable:$true] %s995
          %1001 = dma.vmem_to_hbm [thread:$0]  %s994, 512, %s996, %s966, 128, 256, 8
        $region88: #{tpu_custom_call.1} parent=47 // pred_fallthru
          _
      $region48: #{tpu_custom_call.1} parent=5 // pred_fallthru
        _
      %p1002 = scmp.le.s32.totalorder 2, %s29
      // Predicated region
      $region89: #{tpu_custom_call.1} parent=5 // pred_check
        %p1003 = pneg %p1002
      $region90: #{tpu_custom_call.1} parent=5 // pred_check_branch
        %1005 = sbr.rel (%p1003) target = $region92
      $region91: #{tpu_custom_call.1} parent=5 // pred_region
        %s1006 = ssub.s32 %s29, 2
        // Predicated region
        $region93: #{tpu_custom_call.1} parent=91 // pred_check
          %p1007 = pneg %p236
        $region94: #{tpu_custom_call.1} parent=91 // pred_check_branch
          %1009 = sbr.rel (%p1007) target = $region96
        $region95: #{tpu_custom_call.1} parent=91 // pred_region
          %s1010 = sand.u32 %s221, 1
          %s1011 = scalar_lea.sflag [#allocation6], %s1010
          %s1012 = sand.u32 %s221, 1
          %s1013 = smul.addr %s1012, 8
          %s1014 = scalar_lea.vmem [#allocation16], %s1013
          %1016 = dma.done %s1011, 128
        $region96: #{tpu_custom_call.1} parent=91 // pred_fallthru
          _
        // Predicated region
        $region97: #{tpu_custom_call.1} parent=91 // pred_check
          %p1017 = pneg %p264
        $region98: #{tpu_custom_call.1} parent=91 // pred_check_branch
          %1019 = sbr.rel (%p1017) target = $region100
        $region99: #{tpu_custom_call.1} parent=91 // pred_region
          %s1020 = sand.u32 %s249, 1
          %s1021 = scalar_lea.sflag [#allocation18], %s1020
          %s1022 = sand.u32 %s249, 1
          %s1023 = smul.addr %s1022, 32
          %s1024 = scalar_lea.vmem [#allocation17], %s1023
          %1026 = dma.done %s1021, 512
        $region100: #{tpu_custom_call.1} parent=91 // pred_fallthru
          _
      $region92: #{tpu_custom_call.1} parent=5 // pred_fallthru
        _
    $region6: #{tpu_custom_call.1} parent=1 // loop_footer
      %s33 = sadd.s32 1, %s29
    $region7: #{tpu_custom_call.1} parent=1 // loop_footer_branch
      %28 = sbr.rel target = $region3
    $region8: #{tpu_custom_call.1} parent=1 // loop_exit
      _
    %1027 = vsyncpa [#allocation5], 1
    %s1028 = scalar_lea.sflag [#allocation5], 1
    %1029 = vsyncpa %s1028, 1
    %1030 = vsyncpa [#allocation8], 1
    %s1031 = scalar_lea.sflag [#allocation8], 1
    %1032 = vsyncpa %s1031, 1
    %1033 = vsyncpa [#allocation11], 1
    %1034 = vsyncpa [#allocation14], 1
    %1035 = vsyncpa [#allocation6], 1
    %s1036 = scalar_lea.sflag [#allocation6], 1
    %1037 = vsyncpa %s1036, 1
    %1038 = vsyncpa [#allocation18], 1
    %s1039 = scalar_lea.sflag [#allocation18], 1
    %1040 = vsyncpa %s1039, 1

</llo_original>
